<compile_context>
chip_gen: v6e
topology: v6e:2x2x1
jax: 0.10.0
libtpu: 0.0.40
codegen_flags: <defaults>
</compile_context>

<pallas_src>
import jax
import jax.numpy as jnp
from jax.experimental import pallas as pl
from jax.experimental.pallas import tpu as pltpu

# ----- hyperparameters of the example ConvNorm instance -----
B = 2            # batch
C_IN = 32        # in_channels
C_OUT = 64       # out_channels
T = 16           # temporal length
KSIZE = 5        # kernel_size (odd -> 'same' padding path of ConvNorm)
DILATION = 1
PADDING = DILATION * (KSIZE - 1) // 2
# TODO(synk): stride > 1 is not implemented (ConvNorm default stride=1).

ROWS = B * T                                   # batch folded into sublanes
PARAM_ROWS = ((KSIZE * C_IN + 1 + 7) // 8) * 8  # weight rows + 1 bias row, padded


def convnorm_kernel(x_ref, p_ref, o_ref):
    """x_ref: (B*T, C_IN) activations (batch folded into rows).
    p_ref: (PARAM_ROWS, C_OUT) packed params:
           rows [0, K*C_IN) = conv weight (tap-major, then in-channel),
           row  K*C_IN      = bias.
    o_ref: (B*T, C_OUT)."""
    x = x_ref[...]

    # position-within-sequence of every row (batch is folded into axis 0)
    t = jax.lax.broadcasted_iota(jnp.int32, (ROWS, C_IN), 0) % T

    # Build the tap-shifted concat with XLU rolls + VPU masks so the whole
    # conv becomes a single lane-dense MXU matmul.
    taps = []
    for j in range(KSIZE):
        off = j * DILATION - PADDING           # y[t] needs x[t + off]
        if off == 0:
            taps.append(x)
        else:
            shifted = pltpu.roll(x, shift=(-off) % ROWS, axis=0)
            pos = t + off
            valid = jnp.logical_and(pos >= 0, pos < T)   # zero-pad + don't cross batches
            taps.append(jnp.where(valid, shifted, 0.0))
    x_cat = jnp.concatenate(taps, axis=-1)     # (B*T, K*C_IN)

    w = p_ref[0:KSIZE * C_IN, :]                       # (K*C_IN, C_OUT), static slice
    bias = p_ref[KSIZE * C_IN:KSIZE * C_IN + 1, :]     # (1, C_OUT)

    o_ref[...] = jnp.dot(x_cat, w, preferred_element_type=jnp.float32) + bias


def convnorm(signal, weight, bias):
    """signal: (B, C_IN, T) NCW (PyTorch layout); weight: (C_OUT, C_IN, K);
    bias: (C_OUT,).  Returns (B, C_OUT, T)."""
    # layout plumbing outside the kernel: feature-last, batch folded into rows
    x_rows = jnp.transpose(signal, (0, 2, 1)).reshape(ROWS, C_IN)

    # pack weight (tap-major) + bias into one slab => one parameter DMA
    w_packed = jnp.transpose(weight, (2, 1, 0)).reshape(KSIZE * C_IN, C_OUT)
    slab = jnp.zeros((PARAM_ROWS, C_OUT), jnp.float32)
    slab = slab.at[0:KSIZE * C_IN, :].set(w_packed)
    slab = slab.at[KSIZE * C_IN, :].set(bias)

    out_rows = pl.pallas_call(
        convnorm_kernel,
        out_shape=jax.ShapeDtypeStruct((ROWS, C_OUT), jnp.float32),
        grid=(1,),
        in_specs=[
            pl.BlockSpec((ROWS, C_IN), lambda i: (0, 0)),
            pl.BlockSpec((PARAM_ROWS, C_OUT), lambda i: (0, 0)),
        ],
        out_specs=pl.BlockSpec((ROWS, C_OUT), lambda i: (0, 0)),
        compiler_params=pltpu.CompilerParams(
            dimension_semantics=("arbitrary",)),   # trivial work: don't split TCs
    )(x_rows, slab)

    # back to PyTorch NCW layout
    return jnp.transpose(out_rows.reshape(B, T, C_OUT), (0, 2, 1))


# ------------------------- pure-JAX reference -------------------------
def convnorm_ref(signal, weight, bias):
    out = jax.lax.conv_general_dilated(
        signal, weight, window_strides=(1,),
        padding=[(PADDING, PADDING)], rhs_dilation=(DILATION,),
        dimension_numbers=("NCH", "OIH", "NCH"))
    return out + bias[None, :, None]


if __name__ == "__main__":
    key = jax.random.PRNGKey(0)
    k1, k2, k3 = jax.random.split(key, 3)
    signal = jax.random.normal(k1, (B, C_IN, T), jnp.float32)
    weight = jax.random.normal(k2, (C_OUT, C_IN, KSIZE), jnp.float32) * 0.1
    bias = jax.random.normal(k3, (C_OUT,), jnp.float32) * 0.1

    out = convnorm(signal, weight, bias)
    jax.block_until_ready(out)

    ref = convnorm_ref(signal, weight, bias)
    max_err = float(jnp.max(jnp.abs(out - ref)))
    assert jnp.allclose(out, ref, atol=1e-4, rtol=1e-4), max_err
    print("KERNEL_OK")
</pallas_src>

<mosaic_0001>
module attributes {stable_mosaic.version = 11 : i64} {
  func.func @convnorm_kernel(%arg0: i32, %arg1: memref<32x32xf32, #tpu.memory_space<vmem>>, %arg2: memref<168x64xf32, #tpu.memory_space<vmem>>, %arg3: memref<32x64xf32, #tpu.memory_space<vmem>>) attributes {dimension_semantics = [#tpu.dimension_semantics<arbitrary>], iteration_bounds = array<i64: 1>, scalar_prefetch = 0 : i64, scratch_operands = 0 : i64, tpu.core_type = #tpu.core_type<tc>, window_params = [{pipeline_mode = #tpu.pipeline_mode<synchronous>, transform_indices = @transform_0, window_bounds = array<i64: 32, 32>}, {pipeline_mode = #tpu.pipeline_mode<synchronous>, transform_indices = @transform_1, window_bounds = array<i64: 168, 64>}, {pipeline_mode = #tpu.pipeline_mode<synchronous>, transform_indices = @transform_2, window_bounds = array<i64: 32, 64>}]} {
    %c0 = arith.constant 0 : index
    %c0_0 = arith.constant 0 : index
    %0 = vector.load %arg1[%c0, %c0_0] : memref<32x32xf32, #tpu.memory_space<vmem>>, vector<32x32xf32>
    %1 = tpu.iota {dimensions = array<i32: 0>} : vector<32x32xi32>
    %c16_i32 = arith.constant 16 : i32
    %c0_i32 = arith.constant 0 : i32
    %2 = arith.cmpi eq, %c16_i32, %c0_i32 : i32
    %c1_i32 = arith.constant 1 : i32
    %3 = arith.select %2, %c1_i32, %c16_i32 : i32
    %4 = vector.broadcast %3 : i32 to vector<32x32xi32>
    %5 = arith.remsi %1, %4 : vector<32x32xi32>
    %c0_i32_1 = arith.constant 0 : i32
    %6 = vector.broadcast %c0_i32_1 : i32 to vector<32x32xi32>
    %7 = arith.cmpi ne, %5, %6 : vector<32x32xi32>
    %c0_i32_2 = arith.constant 0 : i32
    %8 = vector.broadcast %c0_i32_2 : i32 to vector<32x32xi32>
    %9 = arith.cmpi slt, %5, %8 : vector<32x32xi32>
    %c0_i32_3 = arith.constant 0 : i32
    %10 = arith.cmpi slt, %3, %c0_i32_3 : i32
    %11 = vector.broadcast %10 : i1 to vector<32x32xi1>
    %12 = vector.broadcast %11 : vector<32x32xi1> to vector<32x32xi1>
    %13 = arith.xori %9, %12 : vector<32x32xi1>
    %14 = arith.andi %13, %7 : vector<32x32xi1>
    %15 = vector.broadcast %3 : i32 to vector<32x32xi32>
    %16 = arith.addi %5, %15 : vector<32x32xi32>
    %17 = arith.select %14, %16, %5 : vector<32x32xi1>, vector<32x32xi32>
    %c2_i32 = arith.constant 2 : i32
    %18 = tpu.dynamic_rotate %0 by %c2_i32 dim 0 : vector<32x32xf32>, i32 -> vector<32x32xf32>
    %c-2_i32 = arith.constant -2 : i32
    %19 = vector.broadcast %c-2_i32 : i32 to vector<32x32xi32>
    %20 = arith.addi %17, %19 : vector<32x32xi32>
    %c0_i32_4 = arith.constant 0 : i32
    %21 = vector.broadcast %c0_i32_4 : i32 to vector<32x32xi32>
    %22 = arith.cmpi sge, %20, %21 : vector<32x32xi32>
    %c16_i32_5 = arith.constant 16 : i32
    %23 = vector.broadcast %c16_i32_5 : i32 to vector<32x32xi32>
    %24 = arith.cmpi slt, %20, %23 : vector<32x32xi32>
    %25 = arith.andi %22, %24 : vector<32x32xi1>
    %cst = arith.constant 0.000000e+00 : f32
    %26 = vector.broadcast %cst : f32 to vector<32x32xf32>
    %27 = arith.select %25, %18, %26 : vector<32x32xi1>, vector<32x32xf32>
    %c1_i32_6 = arith.constant 1 : i32
    %28 = tpu.dynamic_rotate %0 by %c1_i32_6 dim 0 : vector<32x32xf32>, i32 -> vector<32x32xf32>
    %c-1_i32 = arith.constant -1 : i32
    %29 = vector.broadcast %c-1_i32 : i32 to vector<32x32xi32>
    %30 = arith.addi %17, %29 : vector<32x32xi32>
    %c0_i32_7 = arith.constant 0 : i32
    %31 = vector.broadcast %c0_i32_7 : i32 to vector<32x32xi32>
    %32 = arith.cmpi sge, %30, %31 : vector<32x32xi32>
    %c16_i32_8 = arith.constant 16 : i32
    %33 = vector.broadcast %c16_i32_8 : i32 to vector<32x32xi32>
    %34 = arith.cmpi slt, %30, %33 : vector<32x32xi32>
    %35 = arith.andi %32, %34 : vector<32x32xi1>
    %cst_9 = arith.constant 0.000000e+00 : f32
    %36 = vector.broadcast %cst_9 : f32 to vector<32x32xf32>
    %37 = arith.select %35, %28, %36 : vector<32x32xi1>, vector<32x32xf32>
    %c31_i32 = arith.constant 31 : i32
    %38 = tpu.dynamic_rotate %0 by %c31_i32 dim 0 : vector<32x32xf32>, i32 -> vector<32x32xf32>
    %c1_i32_10 = arith.constant 1 : i32
    %39 = vector.broadcast %c1_i32_10 : i32 to vector<32x32xi32>
    %40 = arith.addi %17, %39 : vector<32x32xi32>
    %c0_i32_11 = arith.constant 0 : i32
    %41 = vector.broadcast %c0_i32_11 : i32 to vector<32x32xi32>
    %42 = arith.cmpi sge, %40, %41 : vector<32x32xi32>
    %c16_i32_12 = arith.constant 16 : i32
    %43 = vector.broadcast %c16_i32_12 : i32 to vector<32x32xi32>
    %44 = arith.cmpi slt, %40, %43 : vector<32x32xi32>
    %45 = arith.andi %42, %44 : vector<32x32xi1>
    %cst_13 = arith.constant 0.000000e+00 : f32
    %46 = vector.broadcast %cst_13 : f32 to vector<32x32xf32>
    %47 = arith.select %45, %38, %46 : vector<32x32xi1>, vector<32x32xf32>
    %c30_i32 = arith.constant 30 : i32
    %48 = tpu.dynamic_rotate %0 by %c30_i32 dim 0 : vector<32x32xf32>, i32 -> vector<32x32xf32>
    %c2_i32_14 = arith.constant 2 : i32
    %49 = vector.broadcast %c2_i32_14 : i32 to vector<32x32xi32>
    %50 = arith.addi %17, %49 : vector<32x32xi32>
    %c0_i32_15 = arith.constant 0 : i32
    %51 = vector.broadcast %c0_i32_15 : i32 to vector<32x32xi32>
    %52 = arith.cmpi sge, %50, %51 : vector<32x32xi32>
    %c16_i32_16 = arith.constant 16 : i32
    %53 = vector.broadcast %c16_i32_16 : i32 to vector<32x32xi32>
    %54 = arith.cmpi slt, %50, %53 : vector<32x32xi32>
    %55 = arith.andi %52, %54 : vector<32x32xi1>
    %cst_17 = arith.constant 0.000000e+00 : f32
    %56 = vector.broadcast %cst_17 : f32 to vector<32x32xf32>
    %57 = arith.select %55, %48, %56 : vector<32x32xi1>, vector<32x32xf32>
    %58 = tpu.concatenate %27, %37, %0, %47, %57 in 1 : vector<32x32xf32>, vector<32x32xf32>, vector<32x32xf32>, vector<32x32xf32>, vector<32x32xf32> -> vector<32x160xf32>
    %c0_18 = arith.constant 0 : index
    %c0_19 = arith.constant 0 : index
    %59 = vector.load %arg2[%c0_18, %c0_19] : memref<168x64xf32, #tpu.memory_space<vmem>>, vector<160x64xf32>
    %c160 = arith.constant 160 : index
    %c0_20 = arith.constant 0 : index
    %60 = vector.load %arg2[%c160, %c0_20] : memref<168x64xf32, #tpu.memory_space<vmem>>, vector<1x64xf32>
    %cst_21 = arith.constant dense<0.000000e+00> : vector<32x64xf32>
    %61 = tpu.matmul %58, %59, %cst_21 {dimension_numbers = #tpu.dot_dimension_numbers<[1], [0], [0], [1], [0, 0, 1, 1], [], []>} : vector<32x160xf32>, vector<160x64xf32>, vector<32x64xf32> -> vector<32x64xf32>
    %62 = vector.broadcast %60 : vector<1x64xf32> to vector<32x64xf32>
    %63 = arith.addf %61, %62 : vector<32x64xf32>
    %c0_22 = arith.constant 0 : index
    %c0_23 = arith.constant 0 : index
    %64 = vector.load %arg3[%c0_22, %c0_23] : memref<32x64xf32, #tpu.memory_space<vmem>>, vector<32x64xf32>
    tpu.vector_store %arg3[%c0_22, %c0_23], %63 {strides = array<i32>} : memref<32x64xf32, #tpu.memory_space<vmem>>, vector<32x64xf32>,
    return
  }
  func.func @transform_0(%arg0: i32) -> (i32, i32) {
    %c0_i32 = arith.constant 0 : i32
    %c0_i32_0 = arith.constant 0 : i32
    %c0_i32_1 = arith.constant 0 : i32
    return %c0_i32, %c0_i32_0 : i32, i32
  }
  func.func @transform_1(%arg0: i32) -> (i32, i32) {
    %c0_i32 = arith.constant 0 : i32
    %c0_i32_0 = arith.constant 0 : i32
    %c0_i32_1 = arith.constant 0 : i32
    return %c0_i32, %c0_i32_0 : i32, i32
  }
  func.func @transform_2(%arg0: i32) -> (i32, i32) {
    %c0_i32 = arith.constant 0 : i32
    %c0_i32_0 = arith.constant 0 : i32
    %c0_i32_1 = arith.constant 0 : i32
    return %c0_i32, %c0_i32_0 : i32, i32
  }
}

</mosaic_0001>

<llo_original>
// kernel: tpu_custom_call.1
$region0: #{tpu_custom_call.1}
  #allocation0 [shape = 'u32[]', space=smem, size = 0x4, offset = 0x4, fixed_abs, tag = 'smem constant byte address 0x4 - core index']
  #allocation1 [shape = 'u32[144,128]{1,0:T(1,128)}', space=vmem, size = 0x12000, scoped, tag = 'internal scratch']
  %s0 = inlined_call_operand.vmem [shape: f32[32,32], index: 0, kind: input, shape index: {}]
  %s1 = inlined_call_operand.vmem [shape: f32[168,64], index: 1, kind: input, shape index: {}]
  %s2 = inlined_call_operand.hbm [shape: f32[32,64], index: 2, kind: output, shape index: {}]
  %s3 = sld [smem:[#allocation0]]
  $region18: #{tpu_custom_call.1} parent=0
    _
  %s5 = ssub.s32 1, %s3
  %s6 = scalar_select 0, %s5, %s3
  $region1: #{tpu_custom_call.1} parent=0
    #allocation2 [shape = 'u8[16384]{0}', space=vmem, size = 0x4000, scoped, tag = 'output window, operand 0, single buffered']
    #allocation3 [shape = 's32[1]{0}', space=sflag, size = 0x4, scoped, tag = 'scoped memory for tpu_custom_call.1']
    %7 = vsyncpa [#allocation3], 0
    // Predicated region
    $region2: #{tpu_custom_call.1} parent=1 // pred_check
      _
    $region3: #{tpu_custom_call.1} parent=1 // pred_check_branch
      %9 = sbr.rel (0) target = $region5
    $region4: #{tpu_custom_call.1} parent=1 // pred_region
      _
    $region5: #{tpu_custom_call.1} parent=1 // pred_fallthru
      _
    // Predicated region
    $region6: #{tpu_custom_call.1} parent=1 // pred_check
      _
    $region7: #{tpu_custom_call.1} parent=1 // pred_check_branch
      %11 = sbr.rel (0) target = $region9
    $region8: #{tpu_custom_call.1} parent=1 // pred_region
      _
    $region9: #{tpu_custom_call.1} parent=1 // pred_fallthru
      _
    %v12 = vld [vmem:[%s0] sm:$0xff]
    %v13 = vld [vmem:[%s0 + $0x8] sm:$0xff]
    %v14 = vld [vmem:[%s0 + $0x10] sm:$0xff]
    %v15 = vld [vmem:[%s0 + $0x18] sm:$0xff]
    %v16 = vlaneseq
    %v17 = vshrl.u32 %v16, 7
    %v18 = vadd.s32 %v17, 8
    %v19 = vadd.s32 %v17, 16
    %v20 = vadd.s32 %v17, 24
    %vm21 = vcmp.lt.s32.totalorder %v17, 0
    %v22 = vsub.s32 0, %v17
    %v23 = vsel %vm21, %v22, %v17
    %v24 = vshrl.u32 %v23, 4
    %v25 = vand.u32 %v23, 15
    %v26 = vsub.s32 0, %v25
    %v27 = vsel %vm21, %v26, %v25
    %vm28 = vcmp.lt.s32.totalorder %v18, 0
    %v29 = vsub.s32 0, %v18
    %v30 = vsel %vm28, %v29, %v18
    %v31 = vshrl.u32 %v30, 4
    %v32 = vand.u32 %v30, 15
    %v33 = vsub.s32 0, %v32
    %v34 = vsel %vm28, %v33, %v32
    %vm35 = vcmp.lt.s32.totalorder %v19, 0
    %v36 = vsub.s32 0, %v19
    %v37 = vsel %vm35, %v36, %v19
    %v38 = vshrl.u32 %v37, 4
    %v39 = vand.u32 %v37, 15
    %v40 = vsub.s32 0, %v39
    %v41 = vsel %vm35, %v40, %v39
    %vm42 = vcmp.lt.s32.totalorder %v20, 0
    %v43 = vsub.s32 0, %v20
    %v44 = vsel %vm42, %v43, %v20
    %v45 = vshrl.u32 %v44, 4
    %v46 = vand.u32 %v44, 15
    %v47 = vsub.s32 0, %v46
    %v48 = vsel %vm42, %v47, %v46
    %vm49 = vcmp.ne.s32.totalorder %v27, 0
    %vm50 = vcmp.ne.s32.totalorder %v34, 0
    %vm51 = vcmp.ne.s32.totalorder %v41, 0
    %vm52 = vcmp.ne.s32.totalorder %v48, 0
    %vm53 = vcmp.lt.s32.totalorder %v27, 0
    %vm54 = vcmp.lt.s32.totalorder %v34, 0
    %vm55 = vcmp.lt.s32.totalorder %v41, 0
    %vm56 = vcmp.lt.s32.totalorder %v48, 0
    %vm57 = vmand %vm53, %vm49
    %vm58 = vmand %vm54, %vm50
    %vm59 = vmand %vm55, %vm51
    %vm60 = vmand %vm56, %vm52
    %v61 = vadd.s32 %v27, 16
    %v62 = vadd.s32 %v34, 16
    %v63 = vadd.s32 %v41, 16
    %v64 = vadd.s32 %v48, 16
    %v65 = vsel %vm57, %v61, %v27
    %v66 = vsel %vm58, %v62, %v34
    %v67 = vsel %vm59, %v63, %v41
    %v68 = vsel %vm60, %v64, %v48
    %v69 = vrot.slane %v12, 6
    %v70 = vrot.slane %v13, 6
    %v71 = vrot.slane %v14, 6
    %v72 = vrot.slane %v15, 6
    %vm73 = vcmp.lt.s32.totalorder %v17, 2
    %v74 = vsel %vm73, %v71, %v72
    %v75 = vsel %vm73, %v70, %v71
    %v76 = vsel %vm73, %v69, %v70
    %v77 = vsel %vm73, %v72, %v69
    %v78 = vadd.s32 %v65, 4294967294
    %v79 = vadd.s32 %v66, 4294967294
    %v80 = vadd.s32 %v67, 4294967294
    %v81 = vadd.s32 %v68, 4294967294
    %vm82 = vcmp.ge.s32.totalorder %v78, 0
    %vm83 = vcmp.ge.s32.totalorder %v79, 0
    %vm84 = vcmp.ge.s32.totalorder %v80, 0
    %vm85 = vcmp.ge.s32.totalorder %v81, 0
    %vm86 = vcmp.lt.s32.totalorder %v78, 16
    %vm87 = vcmp.lt.s32.totalorder %v79, 16
    %vm88 = vcmp.lt.s32.totalorder %v80, 16
    %vm89 = vcmp.lt.s32.totalorder %v81, 16
    %vm90 = vmand %vm82, %vm86
    %vm91 = vmand %vm83, %vm87
    %vm92 = vmand %vm84, %vm88
    %vm93 = vmand %vm85, %vm89
    %v94 = vsel %vm90, %v77, 0.0
    %v95 = vsel %vm91, %v76, 0.0
    %v96 = vsel %vm92, %v75, 0.0
    %v97 = vsel %vm93, %v74, 0.0
    %v98 = vrot.slane %v12, 7
    %v99 = vrot.slane %v13, 7
    %v100 = vrot.slane %v14, 7
    %v101 = vrot.slane %v15, 7
    %vm102 = vcmp.lt.s32.totalorder %v17, 1
    %v103 = vsel %vm102, %v100, %v101
    %v104 = vsel %vm102, %v99, %v100
    %v105 = vsel %vm102, %v98, %v99
    %v106 = vsel %vm102, %v101, %v98
    %v107 = vadd.s32 %v65, 4294967295
    %v108 = vadd.s32 %v66, 4294967295
    %v109 = vadd.s32 %v67, 4294967295
    %v110 = vadd.s32 %v68, 4294967295
    %vm111 = vcmp.ge.s32.totalorder %v107, 0
    %vm112 = vcmp.ge.s32.totalorder %v108, 0
    %vm113 = vcmp.ge.s32.totalorder %v109, 0
    %vm114 = vcmp.ge.s32.totalorder %v110, 0
    %vm115 = vcmp.lt.s32.totalorder %v107, 16
    %vm116 = vcmp.lt.s32.totalorder %v108, 16
    %vm117 = vcmp.lt.s32.totalorder %v109, 16
    %vm118 = vcmp.lt.s32.totalorder %v110, 16
    %vm119 = vmand %vm111, %vm115
    %vm120 = vmand %vm112, %vm116
    %vm121 = vmand %vm113, %vm117
    %vm122 = vmand %vm114, %vm118
    %v123 = vsel %vm119, %v106, 0.0
    %v124 = vsel %vm120, %v105, 0.0
    %v125 = vsel %vm121, %v104, 0.0
    %v126 = vsel %vm122, %v103, 0.0
    %v127 = vrot.slane %v12, 1
    %v128 = vrot.slane %v13, 1
    %v129 = vrot.slane %v14, 1
    %v130 = vrot.slane %v15, 1
    %vm131 = vcmp.lt.s32.totalorder %v17, 7
    %v132 = vsel %vm131, %v129, %v130
    %v133 = vsel %vm131, %v128, %v129
    %v134 = vsel %vm131, %v127, %v128
    %v135 = vsel %vm131, %v130, %v127
    %v136 = vadd.s32 %v65, 1
    %v137 = vadd.s32 %v66, 1
    %v138 = vadd.s32 %v67, 1
    %v139 = vadd.s32 %v68, 1
    %vm140 = vcmp.ge.s32.totalorder %v136, 0
    %vm141 = vcmp.ge.s32.totalorder %v137, 0
    %vm142 = vcmp.ge.s32.totalorder %v138, 0
    %vm143 = vcmp.ge.s32.totalorder %v139, 0
    %vm144 = vcmp.lt.s32.totalorder %v136, 16
    %vm145 = vcmp.lt.s32.totalorder %v137, 16
    %vm146 = vcmp.lt.s32.totalorder %v138, 16
    %vm147 = vcmp.lt.s32.totalorder %v139, 16
    %vm148 = vmand %vm140, %vm144
    %vm149 = vmand %vm141, %vm145
    %vm150 = vmand %vm142, %vm146
    %vm151 = vmand %vm143, %vm147
    %v152 = vsel %vm148, %v134, 0.0
    %v153 = vsel %vm149, %v133, 0.0
    %v154 = vsel %vm150, %v132, 0.0
    %v155 = vsel %vm151, %v135, 0.0
    %v156 = vrot.slane %v12, 2
    %v157 = vrot.slane %v13, 2
    %v158 = vrot.slane %v14, 2
    %v159 = vrot.slane %v15, 2
    %vm160 = vcmp.lt.s32.totalorder %v17, 6
    %v161 = vsel %vm160, %v158, %v159
    %v162 = vsel %vm160, %v157, %v158
    %v163 = vsel %vm160, %v156, %v157
    %v164 = vsel %vm160, %v159, %v156
    %v165 = vadd.s32 %v65, 2
    %v166 = vadd.s32 %v66, 2
    %v167 = vadd.s32 %v67, 2
    %v168 = vadd.s32 %v68, 2
    %vm169 = vcmp.ge.s32.totalorder %v165, 0
    %vm170 = vcmp.ge.s32.totalorder %v166, 0
    %vm171 = vcmp.ge.s32.totalorder %v167, 0
    %vm172 = vcmp.ge.s32.totalorder %v168, 0
    %vm173 = vcmp.lt.s32.totalorder %v165, 16
    %vm174 = vcmp.lt.s32.totalorder %v166, 16
    %vm175 = vcmp.lt.s32.totalorder %v167, 16
    %vm176 = vcmp.lt.s32.totalorder %v168, 16
    %vm177 = vmand %vm169, %vm173
    %vm178 = vmand %vm170, %vm174
    %vm179 = vmand %vm171, %vm175
    %vm180 = vmand %vm172, %vm176
    %v181 = vsel %vm177, %v163, 0.0
    %v182 = vsel %vm178, %v162, 0.0
    %v183 = vsel %vm179, %v161, 0.0
    %v184 = vsel %vm180, %v164, 0.0
    %189 = vrot.lane.b32.xlu0 %v123, 32
    %v190 = vpop.permute.xlu0 %189
    %191 = vrot.lane.b32.xlu0 %v124, 32
    %v192 = vpop.permute.xlu0 %191
    %193 = vrot.lane.b32.xlu0 %v125, 32
    %v194 = vpop.permute.xlu0 %193
    %195 = vrot.lane.b32.xlu0 %v126, 32
    %v196 = vpop.permute.xlu0 %195
    %205 = vrot.lane.b32.xlu0 %v12, 64
    %v206 = vpop.permute.xlu0 %205
    %207 = vrot.lane.b32.xlu0 %v13, 64
    %v208 = vpop.permute.xlu0 %207
    %209 = vrot.lane.b32.xlu0 %v14, 64
    %v210 = vpop.permute.xlu0 %209
    %211 = vrot.lane.b32.xlu0 %v15, 64
    %v212 = vpop.permute.xlu0 %211
    %221 = vrot.lane.b32.xlu0 %v152, 96
    %v222 = vpop.permute.xlu0 %221
    %223 = vrot.lane.b32.xlu0 %v153, 96
    %v224 = vpop.permute.xlu0 %223
    %225 = vrot.lane.b32.xlu0 %v154, 96
    %v226 = vpop.permute.xlu0 %225
    %227 = vrot.lane.b32.xlu0 %v155, 96
    %v228 = vpop.permute.xlu0 %227
    %vm233 = vcmask 261120
    %v234 = vsel %vm233, %v94, %v190
    %v235 = vsel %vm233, %v95, %v192
    %v236 = vsel %vm233, %v96, %v194
    %v237 = vsel %vm233, %v97, %v196
    %vm238 = vcmask 523264
    %v239 = vsel %vm238, %v234, %v206
    %v240 = vsel %vm238, %v235, %v208
    %v241 = vsel %vm238, %v236, %v210
    %v242 = vsel %vm238, %v237, %v212
    %vm243 = vcmask 785408
    %v244 = vsel %vm243, %v239, %v222
    %v245 = vsel %vm243, %v240, %v224
    %v246 = vsel %vm243, %v241, %v226
    %v247 = vsel %vm243, %v242, %v228
    %v248 = vld [vmem:[%s1] sm:$0xff]
    %v249 = vld [vmem:[%s1 + $0x8] sm:$0xff]
    %v250 = vld [vmem:[%s1 + $0x10] sm:$0xff]
    %v251 = vld [vmem:[%s1 + $0x18] sm:$0xff]
    %v252 = vld [vmem:[%s1 + $0x20] sm:$0xff]
    %v253 = vld [vmem:[%s1 + $0x28] sm:$0xff]
    %v254 = vld [vmem:[%s1 + $0x30] sm:$0xff]
    %v255 = vld [vmem:[%s1 + $0x38] sm:$0xff]
    %v256 = vld [vmem:[%s1 + $0x40] sm:$0xff]
    %v257 = vld [vmem:[%s1 + $0x48] sm:$0xff]
    %v258 = vld [vmem:[%s1 + $0x50] sm:$0xff]
    %v259 = vld [vmem:[%s1 + $0x58] sm:$0xff]
    %v260 = vld [vmem:[%s1 + $0x60] sm:$0xff]
    %v261 = vld [vmem:[%s1 + $0x68] sm:$0xff]
    %v262 = vld [vmem:[%s1 + $0x70] sm:$0xff]
    %v263 = vld [vmem:[%s1 + $0x78] sm:$0xff]
    %v264 = vld [vmem:[%s1 + $0x80] sm:$0xff]
    %v265 = vld [vmem:[%s1 + $0x88] sm:$0xff]
    %v266 = vld [vmem:[%s1 + $0x90] sm:$0xff]
    %v267 = vld [vmem:[%s1 + $0x98] sm:$0xff]
    %v268 = vld [vmem:[%s1 + $0xa0] sm:$0x1]
    %v269 = vlaneseq
    %v270 = vshrl.u32 %v269, 7
    %v271 = vsub.s32 0, %v270
    %v272 = vrot.slane %v268, %v271
    %v274 = vsel %vm233, %v181, 0
    %v277 = vsel %vm233, %v182, 0
    %v280 = vsel %vm233, %v183, 0
    %v283 = vsel %vm233, %v184, 0
    %285 = vmatprep.subr.mxu0 0.0
    %286 = vmatpush1.msra.mxu0 %v263
    %287 = vmatprep.subr.mxu0 0.0
    %288 = vmatpush1.msra.mxu0 %v262
    %289 = vmatprep.subr.mxu0 0.0
    %290 = vmatpush1.msra.mxu0 %v261
    %291 = vmatprep.subr.mxu0 0.0
    %292 = vmatpush1.msra.mxu0 %v260
    %293 = vmatprep.subr.mxu0 0.0
    %294 = vmatpush1.msra.mxu0 %v259
    %295 = vmatprep.subr.mxu0 0.0
    %296 = vmatpush1.msra.mxu0 %v258
    %297 = vmatprep.subr.mxu0 0.0
    %298 = vmatpush1.msra.mxu0 %v257
    %299 = vmatprep.subr.mxu0 0.0
    %300 = vmatpush1.msra.mxu0 %v256
    %301 = vmatprep.subr.mxu0 0.0
    %302 = vmatpush1.msra.mxu0 %v255
    %303 = vmatprep.subr.mxu0 0.0
    %304 = vmatpush1.msra.mxu0 %v254
    %305 = vmatprep.subr.mxu0 0.0
    %306 = vmatpush1.msra.mxu0 %v253
    %307 = vmatprep.subr.mxu0 0.0
    %308 = vmatpush1.msra.mxu0 %v252
    %309 = vmatprep.subr.mxu0 0.0
    %310 = vmatpush1.msra.mxu0 %v251
    %311 = vmatprep.subr.mxu0 0.0
    %312 = vmatpush1.msra.mxu0 %v250
    %313 = vmatprep.subr.mxu0 0.0
    %314 = vmatpush1.msra.mxu0 %v249
    %315 = vmatprep.subr.mxu0 0.0
    %316 = vmatpush1.msra.mxu0 %v248
    %317 = vmatprep.subr.mxu0 0.0
    %318 = vmatpush2.msra.mxu0 0.0
    %319 = vmatprep.subr.mxu0 0.0
    %320 = vmatpush2.msra.mxu0 0.0
    %321 = vmatprep.subr.mxu0 0.0
    %322 = vmatpush2.msra.mxu0 0.0
    %323 = vmatprep.subr.mxu0 0.0
    %324 = vmatpush2.msra.mxu0 0.0
    %325 = vmatprep.subr.mxu0 0.0
    %326 = vmatpush2.msra.mxu0 0.0
    %327 = vmatprep.subr.mxu0 0.0
    %328 = vmatpush2.msra.mxu0 0.0
    %329 = vmatprep.subr.mxu0 0.0
    %330 = vmatpush2.msra.mxu0 0.0
    %331 = vmatprep.subr.mxu0 0.0
    %332 = vmatpush2.msra.mxu0 0.0
    %333 = vmatprep.subr.mxu0 0.0
    %334 = vmatpush2.msra.mxu0 0.0
    %335 = vmatprep.subr.mxu0 0.0
    %336 = vmatpush2.msra.mxu0 0.0
    %337 = vmatprep.subr.mxu0 0.0
    %338 = vmatpush2.msra.mxu0 0.0
    %339 = vmatprep.subr.mxu0 0.0
    %340 = vmatpush2.msra.mxu0 0.0
    %341 = vmatprep.subr.mxu0 0.0
    %342 = vmatpush2.msra.mxu0 %v267
    %343 = vmatprep.subr.mxu0 0.0
    %344 = vmatpush2.msra.mxu0 %v266
    %345 = vmatprep.subr.mxu0 0.0
    %346 = vmatpush2.msra.mxu0 %v265
    %347 = vmatprep.subr.mxu0 0.0
    %348 = vmatpush2.msra.mxu0 %v264
    %349 = vmatprep.mubr.f32.mxu0 %v274
    %350 = vmatmul.mubr.f32.gmra.mxu0 %v244
    %v351 = vpop.f32.mrf.mxu0
    %v352 = vadd.f32 %v272, %v351
    %v353 = vpop.f32.mrf.mxu0
    %354 = vmatprep.mubr.f32.mxu0 %v277
    %355 = vmatmul.mubr.f32.gmra.mxu0 %v245
    %v356 = vpop.f32.mrf.mxu0
    %v357 = vadd.f32 %v272, %v356
    %v358 = vpop.f32.mrf.mxu0
    %359 = vmatprep.mubr.f32.mxu0 %v280
    %360 = vmatmul.mubr.f32.gmra.mxu0 %v246
    %v361 = vpop.f32.mrf.mxu0
    %v362 = vadd.f32 %v272, %v361
    %v363 = vpop.f32.mrf.mxu0
    %364 = vmatprep.mubr.f32.mxu0 %v283
    %365 = vmatmul.mubr.f32.gmra.mxu0 %v247
    %v366 = vpop.f32.mrf.mxu0
    %v367 = vadd.f32 %v272, %v366
    %v368 = vpop.f32.mrf.mxu0
    %369 = vdwg.mxu0
    %370 = vst.msk [vmem:[#allocation2] sm:$0xff] %vm238, %v352
    %371 = vst.msk [vmem:[#allocation2 + $0x8] sm:$0xff] %vm238, %v357
    %372 = vst.msk [vmem:[#allocation2 + $0x10] sm:$0xff] %vm238, %v362
    %373 = vst.msk [vmem:[#allocation2 + $0x18] sm:$0xff] %vm238, %v367
    // Predicated region
    $region10: #{tpu_custom_call.1} parent=1 // pred_check
      _
    $region11: #{tpu_custom_call.1} parent=1 // pred_check_branch
      %375 = sbr.rel (0) target = $region13
    $region12: #{tpu_custom_call.1} parent=1 // pred_region
      %s377 = ssub.s32 512, 512
      %378 = vsyncadd [#allocation3], %s377
      %s379 = sshll.u32 [#allocation2], 4
      %s380 = int_to_ptr.vmem [resolvable:$true] %s379
      %385 = dma.vmem_to_hbm [thread:$0]  %s380, 512, %s2, [#allocation3], 128, 128, 8
    $region13: #{tpu_custom_call.1} parent=1 // pred_fallthru
      _
    // Predicated region
    $region14: #{tpu_custom_call.1} parent=1 // pred_check
      _
    $region15: #{tpu_custom_call.1} parent=1 // pred_check_branch
      %387 = sbr.rel (0) target = $region17
    $region16: #{tpu_custom_call.1} parent=1 // pred_region
      %388 = dma.done [#allocation3], 512
    $region17: #{tpu_custom_call.1} parent=1 // pred_fallthru
      _
    %389 = vsyncpa [#allocation3], 1

</llo_original>
